<compile_context>
chip_gen: v7x
topology: tpu7x:2x2x1
jax: 0.10.0
libtpu: 0.0.40
codegen_flags: <defaults>
</compile_context>

<pallas_src>
import jax
import jax.numpy as jnp
from jax.experimental import pallas as pl
from jax.experimental.pallas import tpu as pltpu

INPUT_SIZE = 1
HIDDEN = 64


def lstm_kernel(x_ref, wih_ref, whh_ref, b_ref, wout_ref, bout_ref,
                out_ref, xproj_sc):
    T, B, _ = x_ref.shape
    H = HIDDEN

    # ---- input projection hoisted out of the recurrence (runs once) ----
    # INPUT_SIZE == 1: x @ W_ih^T is an outer product -> broadcast multiply on the VPU.
    # Gate column order is (i, f, o, g); i/f/o columns and bias come pre-scaled by 0.5 so a
    # single tanh pass gives all four activations (sigmoid(z) = 0.5*tanh(z/2) + 0.5).
    xproj_sc[...] = x_ref[...] * wih_ref[...] + b_ref[...]   # (T,B,1)*(1,1,4H)+(1,1,4H)

    whh = whh_ref[...]                                        # (H, 4H), resident all steps
    # TODO(synk): on v5e cast whh (and the dot's h operand) to bf16 to avoid the f32 MXU
    # multi-pass emulation; keep carries/elementwise in f32 and re-check the test tolerance.
    # TODO(synk): if the bundle dump shows W_hh re-pushed to the MXU every step, drive the
    # MXU explicitly (pltpu.matmul_push_rhs once, then matmul_acc_lhs/matmul_pop per step).

    def step(t, carry):
        h, c = carry
        gates = xproj_sc[t] + jnp.dot(h, whh, preferred_element_type=jnp.float32)  # (B,4H)
        t_all = jnp.tanh(gates)                    # ONE lane-dense EUP pass over all 4H
        sig = t_all[:, :3 * H] * 0.5 + 0.5         # i | f | o sigmoids recovered
        i_g = sig[:, 0 * H:1 * H]
        f_g = sig[:, 1 * H:2 * H]
        o_g = sig[:, 2 * H:3 * H]
        g_g = t_all[:, 3 * H:]                     # g stays tanh
        c_new = f_g * c + i_g * g_g
        h_new = o_g * jnp.tanh(c_new)
        return h_new, c_new

    h0 = jnp.zeros((B, H), jnp.float32)
    c0 = jnp.zeros((B, H), jnp.float32)
    # Full unroll only for tiny T; partial unroll keeps LLO scheduler visibility without
    # program-size / vreg-pressure blowup at realistic sequence lengths.
    h_fin, _ = jax.lax.fori_loop(0, T, step, (h0, c0), unroll=min(T, 8))

    # Linear(hidden, 1): (B,H) x (H,1) as a VPU multiply + lane reduce (skip N=1 MXU pass).
    out_ref[...] = (jnp.sum(h_fin * wout_ref[...], axis=-1, keepdims=True)
                    + bout_ref[...]).astype(out_ref.dtype)


def prepare_params(params):
    """One-time weight prep: gate reorder, transpose, bias fuse, 0.5 pre-scale, reshapes.

    Cached at init so the per-call wrapper dispatches no per-call weight reshuffling ops.
    """
    H = HIDDEN
    # PyTorch gate blocks (i, f, g, o) -> (i, f, o, g): sigmoid gates contiguous.
    perm = jnp.concatenate([jnp.arange(0, 2 * H),        # i, f
                            jnp.arange(3 * H, 4 * H),    # o
                            jnp.arange(2 * H, 3 * H)])   # g
    # Pre-scale sigmoid-gate (i/f/o) columns by 0.5: sigmoid(z) = 0.5*tanh(z/2) + 0.5.
    scale = jnp.concatenate([jnp.full((3 * H,), 0.5, jnp.float32),
                             jnp.ones((H,), jnp.float32)])
    wih = (params["w_ih"].T[:, perm] * scale[None, :]).reshape(1, 1, 4 * H)   # (1,1,4H)
    whh = params["w_hh"].T[:, perm] * scale[None, :]                          # (H, 4H)
    b = ((params["b_ih"] + params["b_hh"])[perm] * scale).reshape(1, 1, 4 * H)
    wout = params["w_out"].reshape(1, H)
    bout = params["b_out"].reshape(1, 1)
    return {"wih": wih, "whh": whh, "b": b, "wout": wout, "bout": bout}


@jax.jit
def lstm_model_forward(x, prep):
    """x: (B, T, INPUT_SIZE) float32, prep from prepare_params() -> (B, 1) float32."""
    B, T, I = x.shape
    assert I == INPUT_SIZE == 1, "kernel specializes the input projection for INPUT_SIZE == 1"
    H = HIDDEN
    x_tbi = jnp.transpose(x, (1, 0, 2))   # time-major; tiny (T*B floats), fused under jit
    # TODO(synk): for realistic T, ship x lane-dense (B, T) and use a dense (B, T, 4H)
    # projection scratch (or stream it in T-chunks via pltpu.emit_pipeline / a T grid axis with
    # an "arbitrary" accumulator) so x DMA and scratch VMEM stay flat in T — matters first on
    # v5e's 16 MiB scoped-VMEM default and on v7x's 64 MiB physical VMEM; at T=8 it's one tile.
    # TODO(synk): megacore batch split (grid "parallel" over B, v7x 2 TCs) only pays off once B
    # is large enough to saturate one core's per-step MXU/VPU throughput; the recurrence is
    # latency-bound in T, so at small B it just adds per-step pipeline overhead.

    vmem = lambda: pl.BlockSpec(memory_space=pltpu.MemorySpace.VMEM)
    return pl.pallas_call(
        lstm_kernel,
        out_shape=jax.ShapeDtypeStruct((B, 1), jnp.float32),
        in_specs=[vmem() for _ in range(6)],
        out_specs=vmem(),
        scratch_shapes=[pltpu.VMEM((T, B, 4 * H), jnp.float32)],  # hoisted x-projection
    )(x_tbi, prep["wih"], prep["whh"], prep["b"], prep["wout"], prep["bout"])


def reference_forward(x, params):
    """Pure-JAX reference matching torch.nn.LSTM (batch_first) + Linear semantics."""
    B, T, I = x.shape
    H = HIDDEN
    w_ih, w_hh = params["w_ih"], params["w_hh"]
    b = params["b_ih"] + params["b_hh"]

    def step(carry, x_t):
        h, c = carry
        gates = x_t @ w_ih.T + h @ w_hh.T + b
        i_g = jax.nn.sigmoid(gates[:, 0 * H:1 * H])
        f_g = jax.nn.sigmoid(gates[:, 1 * H:2 * H])
        g_g = jnp.tanh(gates[:, 2 * H:3 * H])
        o_g = jax.nn.sigmoid(gates[:, 3 * H:4 * H])
        c = f_g * c + i_g * g_g
        h = o_g * jnp.tanh(c)
        return (h, c), None

    h0 = jnp.zeros((B, H), jnp.float32)
    c0 = jnp.zeros((B, H), jnp.float32)
    (h, _), _ = jax.lax.scan(step, (h0, c0), jnp.transpose(x, (1, 0, 2)))
    return h @ params["w_out"].T + params["b_out"]


def init_params(key):
    """Deterministic init mirroring PyTorch's U(-1/sqrt(H), 1/sqrt(H))."""
    H, I = HIDDEN, INPUT_SIZE
    bound = 1.0 / (H ** 0.5)
    ks = jax.random.split(key, 6)
    u = lambda k, shape: jax.random.uniform(k, shape, jnp.float32, -bound, bound)
    return {
        "w_ih": u(ks[0], (4 * H, I)),
        "w_hh": u(ks[1], (4 * H, H)),
        "b_ih": u(ks[2], (4 * H,)),
        "b_hh": u(ks[3], (4 * H,)),
        "w_out": u(ks[4], (1, H)),
        "b_out": u(ks[5], (1,)),
    }


if __name__ == "__main__":
    key = jax.random.PRNGKey(0)
    pkey, xkey = jax.random.split(key)
    params = init_params(pkey)
    prep = jax.tree_util.tree_map(jax.block_until_ready, prepare_params(params))  # cached once

    B, T = 2, 8
    x = jax.random.normal(xkey, (B, T, INPUT_SIZE), jnp.float32)

    out = jax.block_until_ready(lstm_model_forward(x, prep))
    ref = jax.block_until_ready(reference_forward(x, params))

    assert out.shape == (B, 1), out.shape
    # Slightly relaxed vs 1e-5: the single-pass tanh-based sigmoid changes rounding on the
    # recurrent path (still far below 1e-4 at this size).
    assert jnp.allclose(out, ref, atol=1e-4, rtol=1e-4), (out, ref)
    print("KERNEL_OK")
</pallas_src>

<mosaic_0001>
module attributes {stable_mosaic.version = 11 : i64} {
  func.func @lstm_kernel(%arg0: memref<8x2x1xf32, #tpu.memory_space<vmem>>, %arg1: memref<1x1x256xf32, #tpu.memory_space<vmem>>, %arg2: memref<64x256xf32, #tpu.memory_space<vmem>>, %arg3: memref<1x1x256xf32, #tpu.memory_space<vmem>>, %arg4: memref<1x64xf32, #tpu.memory_space<vmem>>, %arg5: memref<1x1xf32, #tpu.memory_space<vmem>>, %arg6: memref<2x1xf32, #tpu.memory_space<vmem>>, %arg7: memref<8x2x256xf32, #tpu.memory_space<vmem>>) attributes {dimension_semantics = [], scalar_prefetch = 0 : i64, scratch_operands = 1 : i64, tpu.core_type = #tpu.core_type<tc>} {
    %c0 = arith.constant 0 : index
    %c0_0 = arith.constant 0 : index
    %c0_1 = arith.constant 0 : index
    %0 = vector.load %arg0[%c0, %c0_0, %c0_1] : memref<8x2x1xf32, #tpu.memory_space<vmem>>, vector<8x2x1xf32>
    %c0_2 = arith.constant 0 : index
    %c0_3 = arith.constant 0 : index
    %c0_4 = arith.constant 0 : index
    %1 = vector.load %arg1[%c0_2, %c0_3, %c0_4] : memref<1x1x256xf32, #tpu.memory_space<vmem>>, vector<1x1x256xf32>
    %2 = vector.broadcast %0 : vector<8x2x1xf32> to vector<8x2x256xf32>
    %3 = vector.broadcast %1 : vector<1x1x256xf32> to vector<8x2x256xf32>
    %4 = arith.mulf %2, %3 : vector<8x2x256xf32>
    %c0_5 = arith.constant 0 : index
    %c0_6 = arith.constant 0 : index
    %c0_7 = arith.constant 0 : index
    %5 = vector.load %arg3[%c0_5, %c0_6, %c0_7] : memref<1x1x256xf32, #tpu.memory_space<vmem>>, vector<1x1x256xf32>
    %6 = vector.broadcast %5 : vector<1x1x256xf32> to vector<8x2x256xf32>
    %7 = arith.addf %4, %6 : vector<8x2x256xf32>
    %c0_8 = arith.constant 0 : index
    %c0_9 = arith.constant 0 : index
    %c0_10 = arith.constant 0 : index
    %8 = vector.load %arg7[%c0_8, %c0_9, %c0_10] : memref<8x2x256xf32, #tpu.memory_space<vmem>>, vector<8x2x256xf32>
    tpu.vector_store %arg7[%c0_8, %c0_9, %c0_10], %7 {strides = array<i32>} : memref<8x2x256xf32, #tpu.memory_space<vmem>>, vector<8x2x256xf32>,
    %c0_11 = arith.constant 0 : index
    %c0_12 = arith.constant 0 : index
    %9 = vector.load %arg2[%c0_11, %c0_12] : memref<64x256xf32, #tpu.memory_space<vmem>>, vector<64x256xf32>
    %cst = arith.constant 0.000000e+00 : f32
    %10 = vector.broadcast %cst : f32 to vector<2x64xf32>
    %cst_13 = arith.constant 0.000000e+00 : f32
    %11 = vector.broadcast %cst_13 : f32 to vector<2x64xf32>
    %c0_i32 = arith.constant 0 : i32
    %12 = arith.index_cast %c0_i32 : i32 to index
    %c0_14 = arith.constant 0 : index
    %c0_15 = arith.constant 0 : index
    %13 = vector.load %arg7[%12, %c0_14, %c0_15] : memref<8x2x256xf32, #tpu.memory_space<vmem>>, vector<1x2x256xf32>
    %14 = vector.shape_cast %13 : vector<1x2x256xf32> to vector<2x256xf32>
    %cst_16 = arith.constant dense<0.000000e+00> : vector<2x256xf32>
    %15 = tpu.matmul %10, %9, %cst_16 {dimension_numbers = #tpu.dot_dimension_numbers<[1], [0], [0], [1], [0, 0, 1, 1], [], []>} : vector<2x64xf32>, vector<64x256xf32>, vector<2x256xf32> -> vector<2x256xf32>
    %16 = arith.addf %14, %15 : vector<2x256xf32>
    %17 = math.tanh %16 : vector<2x256xf32>
    %18 = vector.extract_strided_slice %17 {offsets = [0, 0], sizes = [2, 192], strides = [1, 1]} : vector<2x256xf32> to vector<2x192xf32>
    %cst_17 = arith.constant 5.000000e-01 : f32
    %19 = vector.broadcast %cst_17 : f32 to vector<2x192xf32>
    %20 = arith.mulf %18, %19 : vector<2x192xf32>
    %cst_18 = arith.constant 5.000000e-01 : f32
    %21 = vector.broadcast %cst_18 : f32 to vector<2x192xf32>
    %22 = arith.addf %20, %21 : vector<2x192xf32>
    %23 = vector.extract_strided_slice %22 {offsets = [0, 0], sizes = [2, 64], strides = [1, 1]} : vector<2x192xf32> to vector<2x64xf32>
    %24 = vector.extract_strided_slice %22 {offsets = [0, 64], sizes = [2, 64], strides = [1, 1]} : vector<2x192xf32> to vector<2x64xf32>
    %25 = vector.extract_strided_slice %22 {offsets = [0, 128], sizes = [2, 64], strides = [1, 1]} : vector<2x192xf32> to vector<2x64xf32>
    %26 = vector.extract_strided_slice %17 {offsets = [0, 192], sizes = [2, 64], strides = [1, 1]} : vector<2x256xf32> to vector<2x64xf32>
    %27 = arith.mulf %24, %11 : vector<2x64xf32>
    %28 = arith.mulf %23, %26 : vector<2x64xf32>
    %29 = arith.addf %27, %28 : vector<2x64xf32>
    %30 = math.tanh %29 : vector<2x64xf32>
    %31 = arith.mulf %25, %30 : vector<2x64xf32>
    %c1_i32 = arith.constant 1 : i32
    %32 = arith.index_cast %c1_i32 : i32 to index
    %c0_19 = arith.constant 0 : index
    %c0_20 = arith.constant 0 : index
    %33 = vector.load %arg7[%32, %c0_19, %c0_20] : memref<8x2x256xf32, #tpu.memory_space<vmem>>, vector<1x2x256xf32>
    %34 = vector.shape_cast %33 : vector<1x2x256xf32> to vector<2x256xf32>
    %cst_21 = arith.constant dense<0.000000e+00> : vector<2x256xf32>
    %35 = tpu.matmul %31, %9, %cst_21 {dimension_numbers = #tpu.dot_dimension_numbers<[1], [0], [0], [1], [0, 0, 1, 1], [], []>} : vector<2x64xf32>, vector<64x256xf32>, vector<2x256xf32> -> vector<2x256xf32>
    %36 = arith.addf %34, %35 : vector<2x256xf32>
    %37 = math.tanh %36 : vector<2x256xf32>
    %38 = vector.extract_strided_slice %37 {offsets = [0, 0], sizes = [2, 192], strides = [1, 1]} : vector<2x256xf32> to vector<2x192xf32>
    %cst_22 = arith.constant 5.000000e-01 : f32
    %39 = vector.broadcast %cst_22 : f32 to vector<2x192xf32>
    %40 = arith.mulf %38, %39 : vector<2x192xf32>
    %cst_23 = arith.constant 5.000000e-01 : f32
    %41 = vector.broadcast %cst_23 : f32 to vector<2x192xf32>
    %42 = arith.addf %40, %41 : vector<2x192xf32>
    %43 = vector.extract_strided_slice %42 {offsets = [0, 0], sizes = [2, 64], strides = [1, 1]} : vector<2x192xf32> to vector<2x64xf32>
    %44 = vector.extract_strided_slice %42 {offsets = [0, 64], sizes = [2, 64], strides = [1, 1]} : vector<2x192xf32> to vector<2x64xf32>
    %45 = vector.extract_strided_slice %42 {offsets = [0, 128], sizes = [2, 64], strides = [1, 1]} : vector<2x192xf32> to vector<2x64xf32>
    %46 = vector.extract_strided_slice %37 {offsets = [0, 192], sizes = [2, 64], strides = [1, 1]} : vector<2x256xf32> to vector<2x64xf32>
    %47 = arith.mulf %44, %29 : vector<2x64xf32>
    %48 = arith.mulf %43, %46 : vector<2x64xf32>
    %49 = arith.addf %47, %48 : vector<2x64xf32>
    %50 = math.tanh %49 : vector<2x64xf32>
    %51 = arith.mulf %45, %50 : vector<2x64xf32>
    %c2_i32 = arith.constant 2 : i32
    %52 = arith.index_cast %c2_i32 : i32 to index
    %c0_24 = arith.constant 0 : index
    %c0_25 = arith.constant 0 : index
    %53 = vector.load %arg7[%52, %c0_24, %c0_25] : memref<8x2x256xf32, #tpu.memory_space<vmem>>, vector<1x2x256xf32>
    %54 = vector.shape_cast %53 : vector<1x2x256xf32> to vector<2x256xf32>
    %cst_26 = arith.constant dense<0.000000e+00> : vector<2x256xf32>
    %55 = tpu.matmul %51, %9, %cst_26 {dimension_numbers = #tpu.dot_dimension_numbers<[1], [0], [0], [1], [0, 0, 1, 1], [], []>} : vector<2x64xf32>, vector<64x256xf32>, vector<2x256xf32> -> vector<2x256xf32>
    %56 = arith.addf %54, %55 : vector<2x256xf32>
    %57 = math.tanh %56 : vector<2x256xf32>
    %58 = vector.extract_strided_slice %57 {offsets = [0, 0], sizes = [2, 192], strides = [1, 1]} : vector<2x256xf32> to vector<2x192xf32>
    %cst_27 = arith.constant 5.000000e-01 : f32
    %59 = vector.broadcast %cst_27 : f32 to vector<2x192xf32>
    %60 = arith.mulf %58, %59 : vector<2x192xf32>
    %cst_28 = arith.constant 5.000000e-01 : f32
    %61 = vector.broadcast %cst_28 : f32 to vector<2x192xf32>
    %62 = arith.addf %60, %61 : vector<2x192xf32>
    %63 = vector.extract_strided_slice %62 {offsets = [0, 0], sizes = [2, 64], strides = [1, 1]} : vector<2x192xf32> to vector<2x64xf32>
    %64 = vector.extract_strided_slice %62 {offsets = [0, 64], sizes = [2, 64], strides = [1, 1]} : vector<2x192xf32> to vector<2x64xf32>
    %65 = vector.extract_strided_slice %62 {offsets = [0, 128], sizes = [2, 64], strides = [1, 1]} : vector<2x192xf32> to vector<2x64xf32>
    %66 = vector.extract_strided_slice %57 {offsets = [0, 192], sizes = [2, 64], strides = [1, 1]} : vector<2x256xf32> to vector<2x64xf32>
    %67 = arith.mulf %64, %49 : vector<2x64xf32>
    %68 = arith.mulf %63, %66 : vector<2x64xf32>
    %69 = arith.addf %67, %68 : vector<2x64xf32>
    %70 = math.tanh %69 : vector<2x64xf32>
    %71 = arith.mulf %65, %70 : vector<2x64xf32>
    %c3_i32 = arith.constant 3 : i32
    %72 = arith.index_cast %c3_i32 : i32 to index
    %c0_29 = arith.constant 0 : index
    %c0_30 = arith.constant 0 : index
    %73 = vector.load %arg7[%72, %c0_29, %c0_30] : memref<8x2x256xf32, #tpu.memory_space<vmem>>, vector<1x2x256xf32>
    %74 = vector.shape_cast %73 : vector<1x2x256xf32> to vector<2x256xf32>
    %cst_31 = arith.constant dense<0.000000e+00> : vector<2x256xf32>
    %75 = tpu.matmul %71, %9, %cst_31 {dimension_numbers = #tpu.dot_dimension_numbers<[1], [0], [0], [1], [0, 0, 1, 1], [], []>} : vector<2x64xf32>, vector<64x256xf32>, vector<2x256xf32> -> vector<2x256xf32>
    %76 = arith.addf %74, %75 : vector<2x256xf32>
    %77 = math.tanh %76 : vector<2x256xf32>
    %78 = vector.extract_strided_slice %77 {offsets = [0, 0], sizes = [2, 192], strides = [1, 1]} : vector<2x256xf32> to vector<2x192xf32>
    %cst_32 = arith.constant 5.000000e-01 : f32
    %79 = vector.broadcast %cst_32 : f32 to vector<2x192xf32>
    %80 = arith.mulf %78, %79 : vector<2x192xf32>
    %cst_33 = arith.constant 5.000000e-01 : f32
    %81 = vector.broadcast %cst_33 : f32 to vector<2x192xf32>
    %82 = arith.addf %80, %81 : vector<2x192xf32>
    %83 = vector.extract_strided_slice %82 {offsets = [0, 0], sizes = [2, 64], strides = [1, 1]} : vector<2x192xf32> to vector<2x64xf32>
    %84 = vector.extract_strided_slice %82 {offsets = [0, 64], sizes = [2, 64], strides = [1, 1]} : vector<2x192xf32> to vector<2x64xf32>
    %85 = vector.extract_strided_slice %82 {offsets = [0, 128], sizes = [2, 64], strides = [1, 1]} : vector<2x192xf32> to vector<2x64xf32>
    %86 = vector.extract_strided_slice %77 {offsets = [0, 192], sizes = [2, 64], strides = [1, 1]} : vector<2x256xf32> to vector<2x64xf32>
    %87 = arith.mulf %84, %69 : vector<2x64xf32>
    %88 = arith.mulf %83, %86 : vector<2x64xf32>
    %89 = arith.addf %87, %88 : vector<2x64xf32>
    %90 = math.tanh %89 : vector<2x64xf32>
    %91 = arith.mulf %85, %90 : vector<2x64xf32>
    %c4_i32 = arith.constant 4 : i32
    %92 = arith.index_cast %c4_i32 : i32 to index
    %c0_34 = arith.constant 0 : index
    %c0_35 = arith.constant 0 : index
    %93 = vector.load %arg7[%92, %c0_34, %c0_35] : memref<8x2x256xf32, #tpu.memory_space<vmem>>, vector<1x2x256xf32>
    %94 = vector.shape_cast %93 : vector<1x2x256xf32> to vector<2x256xf32>
    %cst_36 = arith.constant dense<0.000000e+00> : vector<2x256xf32>
    %95 = tpu.matmul %91, %9, %cst_36 {dimension_numbers = #tpu.dot_dimension_numbers<[1], [0], [0], [1], [0, 0, 1, 1], [], []>} : vector<2x64xf32>, vector<64x256xf32>, vector<2x256xf32> -> vector<2x256xf32>
    %96 = arith.addf %94, %95 : vector<2x256xf32>
    %97 = math.tanh %96 : vector<2x256xf32>
    %98 = vector.extract_strided_slice %97 {offsets = [0, 0], sizes = [2, 192], strides = [1, 1]} : vector<2x256xf32> to vector<2x192xf32>
    %cst_37 = arith.constant 5.000000e-01 : f32
    %99 = vector.broadcast %cst_37 : f32 to vector<2x192xf32>
    %100 = arith.mulf %98, %99 : vector<2x192xf32>
    %cst_38 = arith.constant 5.000000e-01 : f32
    %101 = vector.broadcast %cst_38 : f32 to vector<2x192xf32>
    %102 = arith.addf %100, %101 : vector<2x192xf32>
    %103 = vector.extract_strided_slice %102 {offsets = [0, 0], sizes = [2, 64], strides = [1, 1]} : vector<2x192xf32> to vector<2x64xf32>
    %104 = vector.extract_strided_slice %102 {offsets = [0, 64], sizes = [2, 64], strides = [1, 1]} : vector<2x192xf32> to vector<2x64xf32>
    %105 = vector.extract_strided_slice %102 {offsets = [0, 128], sizes = [2, 64], strides = [1, 1]} : vector<2x192xf32> to vector<2x64xf32>
    %106 = vector.extract_strided_slice %97 {offsets = [0, 192], sizes = [2, 64], strides = [1, 1]} : vector<2x256xf32> to vector<2x64xf32>
    %107 = arith.mulf %104, %89 : vector<2x64xf32>
    %108 = arith.mulf %103, %106 : vector<2x64xf32>
    %109 = arith.addf %107, %108 : vector<2x64xf32>
    %110 = math.tanh %109 : vector<2x64xf32>
    %111 = arith.mulf %105, %110 : vector<2x64xf32>
    %c5_i32 = arith.constant 5 : i32
    %112 = arith.index_cast %c5_i32 : i32 to index
    %c0_39 = arith.constant 0 : index
    %c0_40 = arith.constant 0 : index
    %113 = vector.load %arg7[%112, %c0_39, %c0_40] : memref<8x2x256xf32, #tpu.memory_space<vmem>>, vector<1x2x256xf32>
    %114 = vector.shape_cast %113 : vector<1x2x256xf32> to vector<2x256xf32>
    %cst_41 = arith.constant dense<0.000000e+00> : vector<2x256xf32>
    %115 = tpu.matmul %111, %9, %cst_41 {dimension_numbers = #tpu.dot_dimension_numbers<[1], [0], [0], [1], [0, 0, 1, 1], [], []>} : vector<2x64xf32>, vector<64x256xf32>, vector<2x256xf32> -> vector<2x256xf32>
    %116 = arith.addf %114, %115 : vector<2x256xf32>
    %117 = math.tanh %116 : vector<2x256xf32>
    %118 = vector.extract_strided_slice %117 {offsets = [0, 0], sizes = [2, 192], strides = [1, 1]} : vector<2x256xf32> to vector<2x192xf32>
    %cst_42 = arith.constant 5.000000e-01 : f32
    %119 = vector.broadcast %cst_42 : f32 to vector<2x192xf32>
    %120 = arith.mulf %118, %119 : vector<2x192xf32>
    %cst_43 = arith.constant 5.000000e-01 : f32
    %121 = vector.broadcast %cst_43 : f32 to vector<2x192xf32>
    %122 = arith.addf %120, %121 : vector<2x192xf32>
    %123 = vector.extract_strided_slice %122 {offsets = [0, 0], sizes = [2, 64], strides = [1, 1]} : vector<2x192xf32> to vector<2x64xf32>
    %124 = vector.extract_strided_slice %122 {offsets = [0, 64], sizes = [2, 64], strides = [1, 1]} : vector<2x192xf32> to vector<2x64xf32>
    %125 = vector.extract_strided_slice %122 {offsets = [0, 128], sizes = [2, 64], strides = [1, 1]} : vector<2x192xf32> to vector<2x64xf32>
    %126 = vector.extract_strided_slice %117 {offsets = [0, 192], sizes = [2, 64], strides = [1, 1]} : vector<2x256xf32> to vector<2x64xf32>
    %127 = arith.mulf %124, %109 : vector<2x64xf32>
    %128 = arith.mulf %123, %126 : vector<2x64xf32>
    %129 = arith.addf %127, %128 : vector<2x64xf32>
    %130 = math.tanh %129 : vector<2x64xf32>
    %131 = arith.mulf %125, %130 : vector<2x64xf32>
    %c6_i32 = arith.constant 6 : i32
    %132 = arith.index_cast %c6_i32 : i32 to index
    %c0_44 = arith.constant 0 : index
    %c0_45 = arith.constant 0 : index
    %133 = vector.load %arg7[%132, %c0_44, %c0_45] : memref<8x2x256xf32, #tpu.memory_space<vmem>>, vector<1x2x256xf32>
    %134 = vector.shape_cast %133 : vector<1x2x256xf32> to vector<2x256xf32>
    %cst_46 = arith.constant dense<0.000000e+00> : vector<2x256xf32>
    %135 = tpu.matmul %131, %9, %cst_46 {dimension_numbers = #tpu.dot_dimension_numbers<[1], [0], [0], [1], [0, 0, 1, 1], [], []>} : vector<2x64xf32>, vector<64x256xf32>, vector<2x256xf32> -> vector<2x256xf32>
    %136 = arith.addf %134, %135 : vector<2x256xf32>
    %137 = math.tanh %136 : vector<2x256xf32>
    %138 = vector.extract_strided_slice %137 {offsets = [0, 0], sizes = [2, 192], strides = [1, 1]} : vector<2x256xf32> to vector<2x192xf32>
    %cst_47 = arith.constant 5.000000e-01 : f32
    %139 = vector.broadcast %cst_47 : f32 to vector<2x192xf32>
    %140 = arith.mulf %138, %139 : vector<2x192xf32>
    %cst_48 = arith.constant 5.000000e-01 : f32
    %141 = vector.broadcast %cst_48 : f32 to vector<2x192xf32>
    %142 = arith.addf %140, %141 : vector<2x192xf32>
    %143 = vector.extract_strided_slice %142 {offsets = [0, 0], sizes = [2, 64], strides = [1, 1]} : vector<2x192xf32> to vector<2x64xf32>
    %144 = vector.extract_strided_slice %142 {offsets = [0, 64], sizes = [2, 64], strides = [1, 1]} : vector<2x192xf32> to vector<2x64xf32>
    %145 = vector.extract_strided_slice %142 {offsets = [0, 128], sizes = [2, 64], strides = [1, 1]} : vector<2x192xf32> to vector<2x64xf32>
    %146 = vector.extract_strided_slice %137 {offsets = [0, 192], sizes = [2, 64], strides = [1, 1]} : vector<2x256xf32> to vector<2x64xf32>
    %147 = arith.mulf %144, %129 : vector<2x64xf32>
    %148 = arith.mulf %143, %146 : vector<2x64xf32>
    %149 = arith.addf %147, %148 : vector<2x64xf32>
    %150 = math.tanh %149 : vector<2x64xf32>
    %151 = arith.mulf %145, %150 : vector<2x64xf32>
    %c7_i32 = arith.constant 7 : i32
    %152 = arith.index_cast %c7_i32 : i32 to index
    %c0_49 = arith.constant 0 : index
    %c0_50 = arith.constant 0 : index
    %153 = vector.load %arg7[%152, %c0_49, %c0_50] : memref<8x2x256xf32, #tpu.memory_space<vmem>>, vector<1x2x256xf32>
    %154 = vector.shape_cast %153 : vector<1x2x256xf32> to vector<2x256xf32>
    %cst_51 = arith.constant dense<0.000000e+00> : vector<2x256xf32>
    %155 = tpu.matmul %151, %9, %cst_51 {dimension_numbers = #tpu.dot_dimension_numbers<[1], [0], [0], [1], [0, 0, 1, 1], [], []>} : vector<2x64xf32>, vector<64x256xf32>, vector<2x256xf32> -> vector<2x256xf32>
    %156 = arith.addf %154, %155 : vector<2x256xf32>
    %157 = math.tanh %156 : vector<2x256xf32>
    %158 = vector.extract_strided_slice %157 {offsets = [0, 0], sizes = [2, 192], strides = [1, 1]} : vector<2x256xf32> to vector<2x192xf32>
    %cst_52 = arith.constant 5.000000e-01 : f32
    %159 = vector.broadcast %cst_52 : f32 to vector<2x192xf32>
    %160 = arith.mulf %158, %159 : vector<2x192xf32>
    %cst_53 = arith.constant 5.000000e-01 : f32
    %161 = vector.broadcast %cst_53 : f32 to vector<2x192xf32>
    %162 = arith.addf %160, %161 : vector<2x192xf32>
    %163 = vector.extract_strided_slice %162 {offsets = [0, 0], sizes = [2, 64], strides = [1, 1]} : vector<2x192xf32> to vector<2x64xf32>
    %164 = vector.extract_strided_slice %162 {offsets = [0, 64], sizes = [2, 64], strides = [1, 1]} : vector<2x192xf32> to vector<2x64xf32>
    %165 = vector.extract_strided_slice %162 {offsets = [0, 128], sizes = [2, 64], strides = [1, 1]} : vector<2x192xf32> to vector<2x64xf32>
    %166 = vector.extract_strided_slice %157 {offsets = [0, 192], sizes = [2, 64], strides = [1, 1]} : vector<2x256xf32> to vector<2x64xf32>
    %167 = arith.mulf %164, %149 : vector<2x64xf32>
    %168 = arith.mulf %163, %166 : vector<2x64xf32>
    %169 = arith.addf %167, %168 : vector<2x64xf32>
    %170 = math.tanh %169 : vector<2x64xf32>
    %171 = arith.mulf %165, %170 : vector<2x64xf32>
    %c8_i32 = arith.constant 8 : i32
    %c0_54 = arith.constant 0 : index
    %c0_55 = arith.constant 0 : index
    %172 = vector.load %arg4[%c0_54, %c0_55] : memref<1x64xf32, #tpu.memory_space<vmem>>, vector<1x64xf32>
    %173 = vector.broadcast %172 : vector<1x64xf32> to vector<2x64xf32>
    %174 = arith.mulf %171, %173 : vector<2x64xf32>
    %cst_56 = arith.constant dense<0.000000e+00> : vector<2xf32>
    %175 = vector.multi_reduction <add>, %174, %cst_56 [1] : vector<2x64xf32> to vector<2xf32>
    %176 = vector.shape_cast %175 : vector<2xf32> to vector<2x1xf32>
    %c0_57 = arith.constant 0 : index
    %c0_58 = arith.constant 0 : index
    %177 = vector.load %arg5[%c0_57, %c0_58] : memref<1x1xf32, #tpu.memory_space<vmem>>, vector<1x1xf32>
    %178 = vector.broadcast %177 : vector<1x1xf32> to vector<2x1xf32>
    %179 = arith.addf %176, %178 : vector<2x1xf32>
    %c0_59 = arith.constant 0 : index
    %c0_60 = arith.constant 0 : index
    %180 = vector.load %arg6[%c0_59, %c0_60] : memref<2x1xf32, #tpu.memory_space<vmem>>, vector<2x1xf32>
    tpu.vector_store %arg6[%c0_59, %c0_60], %179 {strides = array<i32>} : memref<2x1xf32, #tpu.memory_space<vmem>>, vector<2x1xf32>,
    return
  }
}

</mosaic_0001>

<llo_original>
// kernel: lstm_model_forward.1
$region0: #{lstm_model_forward.1}
  #allocation0 [shape = 'u32[]', space=smem, size = 0x4, offset = 0x4, fixed_abs, tag = 'smem constant byte address 0x4 - core index']
  #allocation1 [shape = 'u32[144,128]{1,0:T(1,128)}', space=vmem, size = 0x12000, scoped, tag = 'internal scratch']
  #allocation2 [shape = 'f32[8,2,256]{2,1,0:T(2,128)}', space=vmem, size = 0x4000, scoped, tag = 'scratch operand']
  #allocation3 [shape = 'f32[1,1]{1,0:T(1,128)S(1)}', space=vmem, size = 0x200, scoped, tag = 'scoped memory for lstm_model_forward.1']
  %s0 = inlined_call_operand.vmem [shape: f32[8,2,1], index: 0, kind: input, shape index: {}]
  %s1 = inlined_call_operand.vmem [shape: f32[1,1,256], index: 1, kind: input, shape index: {}]
  %s2 = inlined_call_operand.hbm [shape: f32[64,256], index: 2, kind: input, shape index: {}]
  %s3 = inlined_call_operand.vmem [shape: f32[1,1,256], index: 3, kind: input, shape index: {}]
  %s4 = inlined_call_operand.vmem [shape: f32[1,64], index: 4, kind: input, shape index: {}]
  %s5 = inlined_call_operand.<no memory space> [shape: f32[1,1], index: 5, kind: input, shape index: {}]
  %s6 = inlined_call_operand.vmem [shape: f32[2,1], index: 6, kind: output, shape index: {}]
  %s7 = sld [smem:[#allocation0]]
  $region38: #{lstm_model_forward.1} parent=0
    _
  %s9 = ssub.s32 1, %s7
  %s10 = scalar_select 0, %s9, %s7
  %v11 = vstv %s5
  %12 = vst [vmem:[#allocation3] sm:$0x1] %v11
  $region1: #{lstm_model_forward.1} parent=0
    #allocation4 [shape = 'u8[65536]{0}', space=vmem, size = 0x10000, scoped, tag = 'input window, operand 2, single buffered']
    #allocation5 [shape = 's32[1]{0}', space=sflag, size = 0x4, scoped, tag = 'scoped memory for lstm_model_forward.1']
    %13 = vsyncpa [#allocation5], 0
    // Predicated region
    $region2: #{lstm_model_forward.1} parent=1 // pred_check
      _
    $region3: #{lstm_model_forward.1} parent=1 // pred_check_branch
      %15 = sbr.rel (0) target = $region5
    $region4: #{lstm_model_forward.1} parent=1 // pred_region
      _
    $region5: #{lstm_model_forward.1} parent=1 // pred_fallthru
      _
    // Predicated region
    $region6: #{lstm_model_forward.1} parent=1 // pred_check
      _
    $region7: #{lstm_model_forward.1} parent=1 // pred_check_branch
      %17 = sbr.rel (0) target = $region9
    $region8: #{lstm_model_forward.1} parent=1 // pred_region
      _
    $region9: #{lstm_model_forward.1} parent=1 // pred_fallthru
      _
    // Predicated region
    $region10: #{lstm_model_forward.1} parent=1 // pred_check
      _
    $region11: #{lstm_model_forward.1} parent=1 // pred_check_branch
      %19 = sbr.rel (0) target = $region13
    $region12: #{lstm_model_forward.1} parent=1 // pred_region
      %s21 = ssub.s32 2048, 2048
      %22 = vsyncadd [#allocation5], %s21
      %s23 = sshll.u32 [#allocation4], 4
      %s24 = int_to_ptr.vmem [resolvable:$true] %s23
      %29 = dma.hbm_to_vmem [thread:$0]  %s2, 2048, %s24, [#allocation5], 256, 256, 16
    $region13: #{lstm_model_forward.1} parent=1 // pred_fallthru
      _
    // Predicated region
    $region14: #{lstm_model_forward.1} parent=1 // pred_check
      _
    $region15: #{lstm_model_forward.1} parent=1 // pred_check_branch
      %31 = sbr.rel (0) target = $region17
    $region16: #{lstm_model_forward.1} parent=1 // pred_region
      _
    $region17: #{lstm_model_forward.1} parent=1 // pred_fallthru
      _
    // Predicated region
    $region18: #{lstm_model_forward.1} parent=1 // pred_check
      _
    $region19: #{lstm_model_forward.1} parent=1 // pred_check_branch
      %33 = sbr.rel (0) target = $region21
    $region20: #{lstm_model_forward.1} parent=1 // pred_region
      _
    $region21: #{lstm_model_forward.1} parent=1 // pred_fallthru
      _
    // Predicated region
    $region22: #{lstm_model_forward.1} parent=1 // pred_check
      _
    $region23: #{lstm_model_forward.1} parent=1 // pred_check_branch
      %35 = sbr.rel (0) target = $region25
    $region24: #{lstm_model_forward.1} parent=1 // pred_region
      _
    $region25: #{lstm_model_forward.1} parent=1 // pred_fallthru
      _
    // Predicated region
    $region26: #{lstm_model_forward.1} parent=1 // pred_check
      _
    $region27: #{lstm_model_forward.1} parent=1 // pred_check_branch
      %37 = sbr.rel (0) target = $region29
    $region28: #{lstm_model_forward.1} parent=1 // pred_region
      %38 = dma.done [#allocation5], 2048
    $region29: #{lstm_model_forward.1} parent=1 // pred_fallthru
      _
    %v39 = vld [vmem:[%s0] sm:$0x3]
    %v40 = vld [vmem:[%s0 + $0x2] sm:$0x3]
    %v41 = vld [vmem:[%s0 + $0x4] sm:$0x3]
    %v42 = vld [vmem:[%s0 + $0x6] sm:$0x3]
    %v43 = vld [vmem:[%s0 + $0x8] sm:$0x3]
    %v44 = vld [vmem:[%s0 + $0xa] sm:$0x3]
    %v45 = vld [vmem:[%s0 + $0xc] sm:$0x3]
    %v46 = vld [vmem:[%s0 + $0xe] sm:$0x3]
    %v47 = vld [vmem:[%s1] sm:$0x3]
    %49 = vset.pattern.permute.xlu0 0
    %50 = vperm.xlu0 %49, %v39
    %v51 = vpop.permute.xlu0 %50
    %54 = vset.pattern.permute.xlu0 0
    %55 = vperm.xlu0 %54, %v40
    %v56 = vpop.permute.xlu0 %55
    %59 = vset.pattern.permute.xlu0 0
    %60 = vperm.xlu0 %59, %v41
    %v61 = vpop.permute.xlu0 %60
    %64 = vset.pattern.permute.xlu0 0
    %65 = vperm.xlu0 %64, %v42
    %v66 = vpop.permute.xlu0 %65
    %69 = vset.pattern.permute.xlu0 0
    %70 = vperm.xlu0 %69, %v43
    %v71 = vpop.permute.xlu0 %70
    %74 = vset.pattern.permute.xlu0 0
    %75 = vperm.xlu0 %74, %v44
    %v76 = vpop.permute.xlu0 %75
    %79 = vset.pattern.permute.xlu0 0
    %80 = vperm.xlu0 %79, %v45
    %v81 = vpop.permute.xlu0 %80
    %84 = vset.pattern.permute.xlu0 0
    %85 = vperm.xlu0 %84, %v46
    %v86 = vpop.permute.xlu0 %85
    %v89 = vlaneseq
    %v90 = vshrl.u32 %v89, 7
    %v91 = vsub.s32 0, %v90
    %v92 = vrot.slane %v47, %v91
    %v93 = vlaneseq
    %v94 = vshrl.u32 %v93, 7
    %v95 = vsub.s32 1, %v94
    %v96 = vrot.slane %v47, %v95
    %v99 = vmul.f32 %v51, %v92
    %v100 = vmul.f32 %v51, %v96
    %v101 = vmul.f32 %v56, %v92
    %v102 = vmul.f32 %v56, %v96
    %v103 = vmul.f32 %v61, %v92
    %v104 = vmul.f32 %v61, %v96
    %v105 = vmul.f32 %v66, %v92
    %v106 = vmul.f32 %v66, %v96
    %v107 = vmul.f32 %v71, %v92
    %v108 = vmul.f32 %v71, %v96
    %v109 = vmul.f32 %v76, %v92
    %v110 = vmul.f32 %v76, %v96
    %v111 = vmul.f32 %v81, %v92
    %v112 = vmul.f32 %v81, %v96
    %v113 = vmul.f32 %v86, %v92
    %v114 = vmul.f32 %v86, %v96
    %v115 = vld [vmem:[%s3] sm:$0x3]
    %v117 = vlaneseq
    %v118 = vshrl.u32 %v117, 7
    %v119 = vsub.s32 0, %v118
    %v120 = vrot.slane %v115, %v119
    %v121 = vlaneseq
    %v122 = vshrl.u32 %v121, 7
    %v123 = vsub.s32 1, %v122
    %v124 = vrot.slane %v115, %v123
    %v127 = vadd.f32 %v99, %v120
    %v128 = vadd.f32 %v100, %v124
    %v129 = vadd.f32 %v101, %v120
    %v130 = vadd.f32 %v102, %v124
    %v131 = vadd.f32 %v103, %v120
    %v132 = vadd.f32 %v104, %v124
    %v133 = vadd.f32 %v105, %v120
    %v134 = vadd.f32 %v106, %v124
    %v135 = vadd.f32 %v107, %v120
    %v136 = vadd.f32 %v108, %v124
    %v137 = vadd.f32 %v109, %v120
    %v138 = vadd.f32 %v110, %v124
    %v139 = vadd.f32 %v111, %v120
    %v140 = vadd.f32 %v112, %v124
    %v141 = vadd.f32 %v113, %v120
    %v142 = vadd.f32 %v114, %v124
    %v159 = vcombine.low %v127, %v128
    %v161 = vunpack.c.l.s4 1983009808
    %v162 = vunpack.c.0.s8 %v161
    %v163 = vlaneseq
    %v164 = vshrl.u32 %v163, 7
    %v165 = vsub.s32 %v162, %v164
    %v166 = vrot.slane %v159, %v165
    %v167 = vcombine.low %v129, %v130
    %v169 = vunpack.c.l.s4 1983009808
    %v170 = vunpack.c.0.s8 %v169
    %v171 = vlaneseq
    %v172 = vshrl.u32 %v171, 7
    %v173 = vsub.s32 %v170, %v172
    %v174 = vrot.slane %v167, %v173
    %v175 = vcombine.low %v131, %v132
    %v177 = vunpack.c.l.s4 1983009808
    %v178 = vunpack.c.0.s8 %v177
    %v179 = vlaneseq
    %v180 = vshrl.u32 %v179, 7
    %v181 = vsub.s32 %v178, %v180
    %v182 = vrot.slane %v175, %v181
    %v183 = vcombine.low %v133, %v134
    %v185 = vunpack.c.l.s4 1983009808
    %v186 = vunpack.c.0.s8 %v185
    %v187 = vlaneseq
    %v188 = vshrl.u32 %v187, 7
    %v189 = vsub.s32 %v186, %v188
    %v190 = vrot.slane %v183, %v189
    %v191 = vcombine.low %v135, %v136
    %v193 = vunpack.c.l.s4 1983009808
    %v194 = vunpack.c.0.s8 %v193
    %v195 = vlaneseq
    %v196 = vshrl.u32 %v195, 7
    %v197 = vsub.s32 %v194, %v196
    %v198 = vrot.slane %v191, %v197
    %v199 = vcombine.low %v137, %v138
    %v201 = vunpack.c.l.s4 1983009808
    %v202 = vunpack.c.0.s8 %v201
    %v203 = vlaneseq
    %v204 = vshrl.u32 %v203, 7
    %v205 = vsub.s32 %v202, %v204
    %v206 = vrot.slane %v199, %v205
    %v207 = vcombine.low %v139, %v140
    %v209 = vunpack.c.l.s4 1983009808
    %v210 = vunpack.c.0.s8 %v209
    %v211 = vlaneseq
    %v212 = vshrl.u32 %v211, 7
    %v213 = vsub.s32 %v210, %v212
    %v214 = vrot.slane %v207, %v213
    %v215 = vcombine.low %v141, %v142
    %v217 = vunpack.c.l.s4 1983009808
    %v218 = vunpack.c.0.s8 %v217
    %v219 = vlaneseq
    %v220 = vshrl.u32 %v219, 7
    %v221 = vsub.s32 %v218, %v220
    %v222 = vrot.slane %v215, %v221
    %231 = vst [vmem:[#allocation2] sm:$0xf] %v166
    %232 = vst [vmem:[#allocation2 + $0x4] sm:$0xf] %v174
    %233 = vst [vmem:[#allocation2 + $0x8] sm:$0xf] %v182
    %234 = vst [vmem:[#allocation2 + $0xc] sm:$0xf] %v190
    %235 = vst [vmem:[#allocation2 + $0x10] sm:$0xf] %v198
    %236 = vst [vmem:[#allocation2 + $0x14] sm:$0xf] %v206
    %237 = vst [vmem:[#allocation2 + $0x18] sm:$0xf] %v214
    %238 = vst [vmem:[#allocation2 + $0x1c] sm:$0xf] %v222
    %v239 = vld [vmem:[#allocation4] sm:$0xff]
    %v240 = vld [vmem:[#allocation4 + $0x8] sm:$0xff]
    %v241 = vld [vmem:[#allocation4 + $0x10] sm:$0xff]
    %v242 = vld [vmem:[#allocation4 + $0x18] sm:$0xff]
    %v243 = vld [vmem:[#allocation4 + $0x20] sm:$0xff]
    %v244 = vld [vmem:[#allocation4 + $0x28] sm:$0xff]
    %v245 = vld [vmem:[#allocation4 + $0x30] sm:$0xff]
    %v246 = vld [vmem:[#allocation4 + $0x38] sm:$0xff]
    %v247 = vld [vmem:[#allocation4 + $0x40] sm:$0xff]
    %v248 = vld [vmem:[#allocation4 + $0x48] sm:$0xff]
    %v249 = vld [vmem:[#allocation4 + $0x50] sm:$0xff]
    %v250 = vld [vmem:[#allocation4 + $0x58] sm:$0xff]
    %v251 = vld [vmem:[#allocation4 + $0x60] sm:$0xff]
    %v252 = vld [vmem:[#allocation4 + $0x68] sm:$0xff]
    %v253 = vld [vmem:[#allocation4 + $0x70] sm:$0xff]
    %v254 = vld [vmem:[#allocation4 + $0x78] sm:$0xff]
    %v255 = vld [vmem:[#allocation2] sm:$0xf]
    %vm256 = vcmask 523264
    %v258 = vsel %vm256, 0.0, 0
    %260 = vmatprep.subr.mxu0 %v240
    %261 = vmatpush1.msra.mxu0 %v239
    %262 = vmatprep.subr.mxu0 %v242
    %263 = vmatpush1.msra.mxu0 %v241
    %264 = vmatprep.subr.mxu0 %v244
    %265 = vmatpush1.msra.mxu0 %v243
    %266 = vmatprep.subr.mxu0 %v246
    %267 = vmatpush1.msra.mxu0 %v245
    %268 = vmatprep.subr.mxu0 %v248
    %269 = vmatpush1.msra.mxu0 %v247
    %270 = vmatprep.subr.mxu0 %v250
    %271 = vmatpush1.msra.mxu0 %v249
    %272 = vmatprep.subr.mxu0 %v252
    %273 = vmatpush1.msra.mxu0 %v251
    %274 = vmatprep.subr.mxu0 %v254
    %275 = vmatpush1.msra.mxu0 %v253
    %276 = vmatprep.subr.mxu0 0.0
    %277 = vmatpush1.msra.mxu0 0.0
    %278 = vmatprep.subr.mxu0 0.0
    %279 = vmatpush1.msra.mxu0 0.0
    %280 = vmatprep.subr.mxu0 0.0
    %281 = vmatpush1.msra.mxu0 0.0
    %282 = vmatprep.subr.mxu0 0.0
    %283 = vmatpush1.msra.mxu0 0.0
    %284 = vmatprep.subr.mxu0 0.0
    %285 = vmatpush1.msra.mxu0 0.0
    %286 = vmatprep.subr.mxu0 0.0
    %287 = vmatpush1.msra.mxu0 0.0
    %288 = vmatprep.subr.mxu0 0.0
    %289 = vmatpush1.msra.mxu0 0.0
    %290 = vmatprep.subr.mxu0 0.0
    %291 = vmatpush1.msra.mxu0 0.0
    %292 = vmatprep.subr.mxu0 0.0
    %293 = vmatpush1.msra.mxu0 0.0
    %294 = vmatprep.subr.mxu0 0.0
    %295 = vmatpush1.msra.mxu0 0.0
    %296 = vmatprep.subr.mxu0 0.0
    %297 = vmatpush1.msra.mxu0 0.0
    %298 = vmatprep.subr.mxu0 0.0
    %299 = vmatpush1.msra.mxu0 0.0
    %300 = vmatprep.subr.mxu0 0.0
    %301 = vmatpush1.msra.mxu0 0.0
    %302 = vmatprep.subr.mxu0 0.0
    %303 = vmatpush1.msra.mxu0 0.0
    %304 = vmatprep.subr.mxu0 0.0
    %305 = vmatpush1.msra.mxu0 0.0
    %306 = vmatprep.subr.mxu0 0.0
    %307 = vmatpush1.msra.mxu0 0.0
    %308 = vmatprep.subr.mxu0 0.0
    %309 = vmatpush1.msra.mxu0 0.0
    %310 = vmatprep.subr.mxu0 0.0
    %311 = vmatpush1.msra.mxu0 0.0
    %312 = vmatprep.subr.mxu0 0.0
    %313 = vmatpush1.msra.mxu0 0.0
    %314 = vmatprep.subr.mxu0 0.0
    %315 = vmatpush1.msra.mxu0 0.0
    %316 = vmatprep.subr.mxu0 0.0
    %317 = vmatpush1.msra.mxu0 0.0
    %318 = vmatprep.subr.mxu0 0.0
    %319 = vmatpush1.msra.mxu0 0.0
    %320 = vmatprep.subr.mxu0 0.0
    %321 = vmatpush1.msra.mxu0 0.0
    %322 = vmatprep.subr.mxu0 0.0
    %323 = vmatpush1.msra.mxu0 0.0
    %324 = vmatprep.mubr.f32.mxu0 0.0
    %325 = vmatmul.mubr.f32.gmra.mrb[0].mxu0 %v258
    %v326 = vpop.f32.mrb[0].mxu0
    %v327 = vadd.f32 0.0, %v326
    %v328 = vpop.f32.mrb[0].mxu0
    %v329 = vadd.f32 0.0, %v328
    %330 = vdwg.mxu0
    %v333 = vcombine.low %v327, %v329
    %v335 = vunpack.c.l.s4 1983009808
    %v336 = vunpack.c.0.s8 %v335
    %v337 = vlaneseq
    %v338 = vshrl.u32 %v337, 7
    %v339 = vsub.s32 %v336, %v338
    %v340 = vrot.slane %v333, %v339
    %v342 = vadd.f32 %v255, %v340
    %v343 = vtanh.pop %v342
    %v344 = vmul.f32 %v343, 0.5
    %v345 = vadd.f32 %v344, 0.5
    %v346 = vmul.f32 %v345, 0.0
    %348 = vrot.lane.b32.xlu0 %v343, 64
    %v349 = vpop.permute.xlu0 %348
    %v350 = vrot.slane %v349, 2
    %v352 = vmul.f32 %v345, %v350
    %354 = vrot.lane.b32.xlu0 %v352, 64
    %v355 = vpop.permute.xlu0 %354
    %v357 = vadd.f32 %v346, %v355
    %v358 = vtanh.pop %v357
    %v360 = vrot.slane %v345, 2
    %363 = vrot.lane.b32.xlu0 %v358, 64
    %v364 = vpop.permute.xlu0 %363
    %v366 = vmul.f32 %v360, %v364
    %s367 = scalar_lea.vmem [#allocation2], 4
    %v368 = vld [vmem:[%s367] sm:$0xf]
    %v370 = vsel %vm256, %v366, 0
    %372 = vmatprep.subr.mxu0 %v240
    %373 = vmatpush1.msra.mxu0 %v239
    %374 = vmatprep.subr.mxu0 %v242
    %375 = vmatpush1.msra.mxu0 %v241
    %376 = vmatprep.subr.mxu0 %v244
    %377 = vmatpush1.msra.mxu0 %v243
    %378 = vmatprep.subr.mxu0 %v246
    %379 = vmatpush1.msra.mxu0 %v245
    %380 = vmatprep.subr.mxu0 %v248
    %381 = vmatpush1.msra.mxu0 %v247
    %382 = vmatprep.subr.mxu0 %v250
    %383 = vmatpush1.msra.mxu0 %v249
    %384 = vmatprep.subr.mxu0 %v252
    %385 = vmatpush1.msra.mxu0 %v251
    %386 = vmatprep.subr.mxu0 %v254
    %387 = vmatpush1.msra.mxu0 %v253
    %388 = vmatprep.subr.mxu0 0.0
    %389 = vmatpush1.msra.mxu0 0.0
    %390 = vmatprep.subr.mxu0 0.0
    %391 = vmatpush1.msra.mxu0 0.0
    %392 = vmatprep.subr.mxu0 0.0
    %393 = vmatpush1.msra.mxu0 0.0
    %394 = vmatprep.subr.mxu0 0.0
    %395 = vmatpush1.msra.mxu0 0.0
    %396 = vmatprep.subr.mxu0 0.0
    %397 = vmatpush1.msra.mxu0 0.0
    %398 = vmatprep.subr.mxu0 0.0
    %399 = vmatpush1.msra.mxu0 0.0
    %400 = vmatprep.subr.mxu0 0.0
    %401 = vmatpush1.msra.mxu0 0.0
    %402 = vmatprep.subr.mxu0 0.0
    %403 = vmatpush1.msra.mxu0 0.0
    %404 = vmatprep.subr.mxu0 0.0
    %405 = vmatpush1.msra.mxu0 0.0
    %406 = vmatprep.subr.mxu0 0.0
    %407 = vmatpush1.msra.mxu0 0.0
    %408 = vmatprep.subr.mxu0 0.0
    %409 = vmatpush1.msra.mxu0 0.0
    %410 = vmatprep.subr.mxu0 0.0
    %411 = vmatpush1.msra.mxu0 0.0
    %412 = vmatprep.subr.mxu0 0.0
    %413 = vmatpush1.msra.mxu0 0.0
    %414 = vmatprep.subr.mxu0 0.0
    %415 = vmatpush1.msra.mxu0 0.0
    %416 = vmatprep.subr.mxu0 0.0
    %417 = vmatpush1.msra.mxu0 0.0
    %418 = vmatprep.subr.mxu0 0.0
    %419 = vmatpush1.msra.mxu0 0.0
    %420 = vmatprep.subr.mxu0 0.0
    %421 = vmatpush1.msra.mxu0 0.0
    %422 = vmatprep.subr.mxu0 0.0
    %423 = vmatpush1.msra.mxu0 0.0
    %424 = vmatprep.subr.mxu0 0.0
    %425 = vmatpush1.msra.mxu0 0.0
    %426 = vmatprep.subr.mxu0 0.0
    %427 = vmatpush1.msra.mxu0 0.0
    %428 = vmatprep.subr.mxu0 0.0
    %429 = vmatpush1.msra.mxu0 0.0
    %430 = vmatprep.subr.mxu0 0.0
    %431 = vmatpush1.msra.mxu0 0.0
    %432 = vmatprep.subr.mxu0 0.0
    %433 = vmatpush1.msra.mxu0 0.0
    %434 = vmatprep.subr.mxu0 0.0
    %435 = vmatpush1.msra.mxu0 0.0
    %436 = vmatprep.mubr.f32.mxu0 0.0
    %437 = vmatmul.mubr.f32.gmra.mrb[0].mxu0 %v370
    %v438 = vpop.f32.mrb[0].mxu0
    %v439 = vadd.f32 0.0, %v438
    %v440 = vpop.f32.mrb[0].mxu0
    %v441 = vadd.f32 0.0, %v440
    %442 = vdwg.mxu0
    %v445 = vcombine.low %v439, %v441
    %v447 = vunpack.c.l.s4 1983009808
    %v448 = vunpack.c.0.s8 %v447
    %v449 = vlaneseq
    %v450 = vshrl.u32 %v449, 7
    %v451 = vsub.s32 %v448, %v450
    %v452 = vrot.slane %v445, %v451
    %v454 = vadd.f32 %v368, %v452
    %v455 = vtanh.pop %v454
    %v456 = vmul.f32 %v455, 0.5
    %v457 = vadd.f32 %v456, 0.5
    %v458 = vmul.f32 %v457, %v357
    %460 = vrot.lane.b32.xlu0 %v455, 64
    %v461 = vpop.permute.xlu0 %460
    %v462 = vrot.slane %v461, 2
    %v464 = vmul.f32 %v457, %v462
    %466 = vrot.lane.b32.xlu0 %v464, 64
    %v467 = vpop.permute.xlu0 %466
    %v469 = vadd.f32 %v458, %v467
    %v470 = vtanh.pop %v469
    %v472 = vrot.slane %v457, 2
    %475 = vrot.lane.b32.xlu0 %v470, 64
    %v476 = vpop.permute.xlu0 %475
    %v478 = vmul.f32 %v472, %v476
    %s479 = scalar_lea.vmem [#allocation2], 8
    %v480 = vld [vmem:[%s479] sm:$0xf]
    %v482 = vsel %vm256, %v478, 0
    %484 = vmatprep.subr.mxu0 %v240
    %485 = vmatpush1.msra.mxu0 %v239
    %486 = vmatprep.subr.mxu0 %v242
    %487 = vmatpush1.msra.mxu0 %v241
    %488 = vmatprep.subr.mxu0 %v244
    %489 = vmatpush1.msra.mxu0 %v243
    %490 = vmatprep.subr.mxu0 %v246
    %491 = vmatpush1.msra.mxu0 %v245
    %492 = vmatprep.subr.mxu0 %v248
    %493 = vmatpush1.msra.mxu0 %v247
    %494 = vmatprep.subr.mxu0 %v250
    %495 = vmatpush1.msra.mxu0 %v249
    %496 = vmatprep.subr.mxu0 %v252
    %497 = vmatpush1.msra.mxu0 %v251
    %498 = vmatprep.subr.mxu0 %v254
    %499 = vmatpush1.msra.mxu0 %v253
    %500 = vmatprep.subr.mxu0 0.0
    %501 = vmatpush1.msra.mxu0 0.0
    %502 = vmatprep.subr.mxu0 0.0
    %503 = vmatpush1.msra.mxu0 0.0
    %504 = vmatprep.subr.mxu0 0.0
    %505 = vmatpush1.msra.mxu0 0.0
    %506 = vmatprep.subr.mxu0 0.0
    %507 = vmatpush1.msra.mxu0 0.0
    %508 = vmatprep.subr.mxu0 0.0
    %509 = vmatpush1.msra.mxu0 0.0
    %510 = vmatprep.subr.mxu0 0.0
    %511 = vmatpush1.msra.mxu0 0.0
    %512 = vmatprep.subr.mxu0 0.0
    %513 = vmatpush1.msra.mxu0 0.0
    %514 = vmatprep.subr.mxu0 0.0
    %515 = vmatpush1.msra.mxu0 0.0
    %516 = vmatprep.subr.mxu0 0.0
    %517 = vmatpush1.msra.mxu0 0.0
    %518 = vmatprep.subr.mxu0 0.0
    %519 = vmatpush1.msra.mxu0 0.0
    %520 = vmatprep.subr.mxu0 0.0
    %521 = vmatpush1.msra.mxu0 0.0
    %522 = vmatprep.subr.mxu0 0.0
    %523 = vmatpush1.msra.mxu0 0.0
    %524 = vmatprep.subr.mxu0 0.0
    %525 = vmatpush1.msra.mxu0 0.0
    %526 = vmatprep.subr.mxu0 0.0
    %527 = vmatpush1.msra.mxu0 0.0
    %528 = vmatprep.subr.mxu0 0.0
    %529 = vmatpush1.msra.mxu0 0.0
    %530 = vmatprep.subr.mxu0 0.0
    %531 = vmatpush1.msra.mxu0 0.0
    %532 = vmatprep.subr.mxu0 0.0
    %533 = vmatpush1.msra.mxu0 0.0
    %534 = vmatprep.subr.mxu0 0.0
    %535 = vmatpush1.msra.mxu0 0.0
    %536 = vmatprep.subr.mxu0 0.0
    %537 = vmatpush1.msra.mxu0 0.0
    %538 = vmatprep.subr.mxu0 0.0
    %539 = vmatpush1.msra.mxu0 0.0
    %540 = vmatprep.subr.mxu0 0.0
    %541 = vmatpush1.msra.mxu0 0.0
    %542 = vmatprep.subr.mxu0 0.0
    %543 = vmatpush1.msra.mxu0 0.0
    %544 = vmatprep.subr.mxu0 0.0
    %545 = vmatpush1.msra.mxu0 0.0
    %546 = vmatprep.subr.mxu0 0.0
    %547 = vmatpush1.msra.mxu0 0.0
    %548 = vmatprep.mubr.f32.mxu0 0.0
    %549 = vmatmul.mubr.f32.gmra.mrb[0].mxu0 %v482
    %v550 = vpop.f32.mrb[0].mxu0
    %v551 = vadd.f32 0.0, %v550
    %v552 = vpop.f32.mrb[0].mxu0
    %v553 = vadd.f32 0.0, %v552
    %554 = vdwg.mxu0
    %v557 = vcombine.low %v551, %v553
    %v559 = vunpack.c.l.s4 1983009808
    %v560 = vunpack.c.0.s8 %v559
    %v561 = vlaneseq
    %v562 = vshrl.u32 %v561, 7
    %v563 = vsub.s32 %v560, %v562
    %v564 = vrot.slane %v557, %v563
    %v566 = vadd.f32 %v480, %v564
    %v567 = vtanh.pop %v566
    %v568 = vmul.f32 %v567, 0.5
    %v569 = vadd.f32 %v568, 0.5
    %v570 = vmul.f32 %v569, %v469
    %572 = vrot.lane.b32.xlu0 %v567, 64
    %v573 = vpop.permute.xlu0 %572
    %v574 = vrot.slane %v573, 2
    %v576 = vmul.f32 %v569, %v574
    %578 = vrot.lane.b32.xlu0 %v576, 64
    %v579 = vpop.permute.xlu0 %578
    %v581 = vadd.f32 %v570, %v579
    %v582 = vtanh.pop %v581
    %v584 = vrot.slane %v569, 2
    %587 = vrot.lane.b32.xlu0 %v582, 64
    %v588 = vpop.permute.xlu0 %587
    %v590 = vmul.f32 %v584, %v588
    %s591 = scalar_lea.vmem [#allocation2], 12
    %v592 = vld [vmem:[%s591] sm:$0xf]
    %v594 = vsel %vm256, %v590, 0
    %596 = vmatprep.subr.mxu0 %v240
    %597 = vmatpush1.msra.mxu0 %v239
    %598 = vmatprep.subr.mxu0 %v242
    %599 = vmatpush1.msra.mxu0 %v241
    %600 = vmatprep.subr.mxu0 %v244
    %601 = vmatpush1.msra.mxu0 %v243
    %602 = vmatprep.subr.mxu0 %v246
    %603 = vmatpush1.msra.mxu0 %v245
    %604 = vmatprep.subr.mxu0 %v248
    %605 = vmatpush1.msra.mxu0 %v247
    %606 = vmatprep.subr.mxu0 %v250
    %607 = vmatpush1.msra.mxu0 %v249
    %608 = vmatprep.subr.mxu0 %v252
    %609 = vmatpush1.msra.mxu0 %v251
    %610 = vmatprep.subr.mxu0 %v254
    %611 = vmatpush1.msra.mxu0 %v253
    %612 = vmatprep.subr.mxu0 0.0
    %613 = vmatpush1.msra.mxu0 0.0
    %614 = vmatprep.subr.mxu0 0.0
    %615 = vmatpush1.msra.mxu0 0.0
    %616 = vmatprep.subr.mxu0 0.0
    %617 = vmatpush1.msra.mxu0 0.0
    %618 = vmatprep.subr.mxu0 0.0
    %619 = vmatpush1.msra.mxu0 0.0
    %620 = vmatprep.subr.mxu0 0.0
    %621 = vmatpush1.msra.mxu0 0.0
    %622 = vmatprep.subr.mxu0 0.0
    %623 = vmatpush1.msra.mxu0 0.0
    %624 = vmatprep.subr.mxu0 0.0
    %625 = vmatpush1.msra.mxu0 0.0
    %626 = vmatprep.subr.mxu0 0.0
    %627 = vmatpush1.msra.mxu0 0.0
    %628 = vmatprep.subr.mxu0 0.0
    %629 = vmatpush1.msra.mxu0 0.0
    %630 = vmatprep.subr.mxu0 0.0
    %631 = vmatpush1.msra.mxu0 0.0
    %632 = vmatprep.subr.mxu0 0.0
    %633 = vmatpush1.msra.mxu0 0.0
    %634 = vmatprep.subr.mxu0 0.0
    %635 = vmatpush1.msra.mxu0 0.0
    %636 = vmatprep.subr.mxu0 0.0
    %637 = vmatpush1.msra.mxu0 0.0
    %638 = vmatprep.subr.mxu0 0.0
    %639 = vmatpush1.msra.mxu0 0.0
    %640 = vmatprep.subr.mxu0 0.0
    %641 = vmatpush1.msra.mxu0 0.0
    %642 = vmatprep.subr.mxu0 0.0
    %643 = vmatpush1.msra.mxu0 0.0
    %644 = vmatprep.subr.mxu0 0.0
    %645 = vmatpush1.msra.mxu0 0.0
    %646 = vmatprep.subr.mxu0 0.0
    %647 = vmatpush1.msra.mxu0 0.0
    %648 = vmatprep.subr.mxu0 0.0
    %649 = vmatpush1.msra.mxu0 0.0
    %650 = vmatprep.subr.mxu0 0.0
    %651 = vmatpush1.msra.mxu0 0.0
    %652 = vmatprep.subr.mxu0 0.0
    %653 = vmatpush1.msra.mxu0 0.0
    %654 = vmatprep.subr.mxu0 0.0
    %655 = vmatpush1.msra.mxu0 0.0
    %656 = vmatprep.subr.mxu0 0.0
    %657 = vmatpush1.msra.mxu0 0.0
    %658 = vmatprep.subr.mxu0 0.0
    %659 = vmatpush1.msra.mxu0 0.0
    %660 = vmatprep.mubr.f32.mxu0 0.0
    %661 = vmatmul.mubr.f32.gmra.mrb[0].mxu0 %v594
    %v662 = vpop.f32.mrb[0].mxu0
    %v663 = vadd.f32 0.0, %v662
    %v664 = vpop.f32.mrb[0].mxu0
    %v665 = vadd.f32 0.0, %v664
    %666 = vdwg.mxu0
    %v669 = vcombine.low %v663, %v665
    %v671 = vunpack.c.l.s4 1983009808
    %v672 = vunpack.c.0.s8 %v671
    %v673 = vlaneseq
    %v674 = vshrl.u32 %v673, 7
    %v675 = vsub.s32 %v672, %v674
    %v676 = vrot.slane %v669, %v675
    %v678 = vadd.f32 %v592, %v676
    %v679 = vtanh.pop %v678
    %v680 = vmul.f32 %v679, 0.5
    %v681 = vadd.f32 %v680, 0.5
    %v682 = vmul.f32 %v681, %v581
    %684 = vrot.lane.b32.xlu0 %v679, 64
    %v685 = vpop.permute.xlu0 %684
    %v686 = vrot.slane %v685, 2
    %v688 = vmul.f32 %v681, %v686
    %690 = vrot.lane.b32.xlu0 %v688, 64
    %v691 = vpop.permute.xlu0 %690
    %v693 = vadd.f32 %v682, %v691
    %v694 = vtanh.pop %v693
    %v696 = vrot.slane %v681, 2
    %699 = vrot.lane.b32.xlu0 %v694, 64
    %v700 = vpop.permute.xlu0 %699
    %v702 = vmul.f32 %v696, %v700
    %s703 = scalar_lea.vmem [#allocation2], 16
    %v704 = vld [vmem:[%s703] sm:$0xf]
    %v706 = vsel %vm256, %v702, 0
    %708 = vmatprep.subr.mxu0 %v240
    %709 = vmatpush1.msra.mxu0 %v239
    %710 = vmatprep.subr.mxu0 %v242
    %711 = vmatpush1.msra.mxu0 %v241
    %712 = vmatprep.subr.mxu0 %v244
    %713 = vmatpush1.msra.mxu0 %v243
    %714 = vmatprep.subr.mxu0 %v246
    %715 = vmatpush1.msra.mxu0 %v245
    %716 = vmatprep.subr.mxu0 %v248
    %717 = vmatpush1.msra.mxu0 %v247
    %718 = vmatprep.subr.mxu0 %v250
    %719 = vmatpush1.msra.mxu0 %v249
    %720 = vmatprep.subr.mxu0 %v252
    %721 = vmatpush1.msra.mxu0 %v251
    %722 = vmatprep.subr.mxu0 %v254
    %723 = vmatpush1.msra.mxu0 %v253
    %724 = vmatprep.subr.mxu0 0.0
    %725 = vmatpush1.msra.mxu0 0.0
    %726 = vmatprep.subr.mxu0 0.0
    %727 = vmatpush1.msra.mxu0 0.0
    %728 = vmatprep.subr.mxu0 0.0
    %729 = vmatpush1.msra.mxu0 0.0
    %730 = vmatprep.subr.mxu0 0.0
    %731 = vmatpush1.msra.mxu0 0.0
    %732 = vmatprep.subr.mxu0 0.0
    %733 = vmatpush1.msra.mxu0 0.0
    %734 = vmatprep.subr.mxu0 0.0
    %735 = vmatpush1.msra.mxu0 0.0
    %736 = vmatprep.subr.mxu0 0.0
    %737 = vmatpush1.msra.mxu0 0.0
    %738 = vmatprep.subr.mxu0 0.0
    %739 = vmatpush1.msra.mxu0 0.0
    %740 = vmatprep.subr.mxu0 0.0
    %741 = vmatpush1.msra.mxu0 0.0
    %742 = vmatprep.subr.mxu0 0.0
    %743 = vmatpush1.msra.mxu0 0.0
    %744 = vmatprep.subr.mxu0 0.0
    %745 = vmatpush1.msra.mxu0 0.0
    %746 = vmatprep.subr.mxu0 0.0
    %747 = vmatpush1.msra.mxu0 0.0
    %748 = vmatprep.subr.mxu0 0.0
    %749 = vmatpush1.msra.mxu0 0.0
    %750 = vmatprep.subr.mxu0 0.0
    %751 = vmatpush1.msra.mxu0 0.0
    %752 = vmatprep.subr.mxu0 0.0
    %753 = vmatpush1.msra.mxu0 0.0
    %754 = vmatprep.subr.mxu0 0.0
    %755 = vmatpush1.msra.mxu0 0.0
    %756 = vmatprep.subr.mxu0 0.0
    %757 = vmatpush1.msra.mxu0 0.0
    %758 = vmatprep.subr.mxu0 0.0
    %759 = vmatpush1.msra.mxu0 0.0
    %760 = vmatprep.subr.mxu0 0.0
    %761 = vmatpush1.msra.mxu0 0.0
    %762 = vmatprep.subr.mxu0 0.0
    %763 = vmatpush1.msra.mxu0 0.0
    %764 = vmatprep.subr.mxu0 0.0
    %765 = vmatpush1.msra.mxu0 0.0
    %766 = vmatprep.subr.mxu0 0.0
    %767 = vmatpush1.msra.mxu0 0.0
    %768 = vmatprep.subr.mxu0 0.0
    %769 = vmatpush1.msra.mxu0 0.0
    %770 = vmatprep.subr.mxu0 0.0
    %771 = vmatpush1.msra.mxu0 0.0
    %772 = vmatprep.mubr.f32.mxu0 0.0
    %773 = vmatmul.mubr.f32.gmra.mrb[0].mxu0 %v706
    %v774 = vpop.f32.mrb[0].mxu0
    %v775 = vadd.f32 0.0, %v774
    %v776 = vpop.f32.mrb[0].mxu0
    %v777 = vadd.f32 0.0, %v776
    %778 = vdwg.mxu0
    %v781 = vcombine.low %v775, %v777
    %v783 = vunpack.c.l.s4 1983009808
    %v784 = vunpack.c.0.s8 %v783
    %v785 = vlaneseq
    %v786 = vshrl.u32 %v785, 7
    %v787 = vsub.s32 %v784, %v786
    %v788 = vrot.slane %v781, %v787
    %v790 = vadd.f32 %v704, %v788
    %v791 = vtanh.pop %v790
    %v792 = vmul.f32 %v791, 0.5
    %v793 = vadd.f32 %v792, 0.5
    %v794 = vmul.f32 %v793, %v693
    %796 = vrot.lane.b32.xlu0 %v791, 64
    %v797 = vpop.permute.xlu0 %796
    %v798 = vrot.slane %v797, 2
    %v800 = vmul.f32 %v793, %v798
    %802 = vrot.lane.b32.xlu0 %v800, 64
    %v803 = vpop.permute.xlu0 %802
    %v805 = vadd.f32 %v794, %v803
    %v806 = vtanh.pop %v805
    %v808 = vrot.slane %v793, 2
    %811 = vrot.lane.b32.xlu0 %v806, 64
    %v812 = vpop.permute.xlu0 %811
    %v814 = vmul.f32 %v808, %v812
    %s815 = scalar_lea.vmem [#allocation2], 20
    %v816 = vld [vmem:[%s815] sm:$0xf]
    %v818 = vsel %vm256, %v814, 0
    %820 = vmatprep.subr.mxu0 %v240
    %821 = vmatpush1.msra.mxu0 %v239
    %822 = vmatprep.subr.mxu0 %v242
    %823 = vmatpush1.msra.mxu0 %v241
    %824 = vmatprep.subr.mxu0 %v244
    %825 = vmatpush1.msra.mxu0 %v243
    %826 = vmatprep.subr.mxu0 %v246
    %827 = vmatpush1.msra.mxu0 %v245
    %828 = vmatprep.subr.mxu0 %v248
    %829 = vmatpush1.msra.mxu0 %v247
    %830 = vmatprep.subr.mxu0 %v250
    %831 = vmatpush1.msra.mxu0 %v249
    %832 = vmatprep.subr.mxu0 %v252
    %833 = vmatpush1.msra.mxu0 %v251
    %834 = vmatprep.subr.mxu0 %v254
    %835 = vmatpush1.msra.mxu0 %v253
    %836 = vmatprep.subr.mxu0 0.0
    %837 = vmatpush1.msra.mxu0 0.0
    %838 = vmatprep.subr.mxu0 0.0
    %839 = vmatpush1.msra.mxu0 0.0
    %840 = vmatprep.subr.mxu0 0.0
    %841 = vmatpush1.msra.mxu0 0.0
    %842 = vmatprep.subr.mxu0 0.0
    %843 = vmatpush1.msra.mxu0 0.0
    %844 = vmatprep.subr.mxu0 0.0
    %845 = vmatpush1.msra.mxu0 0.0
    %846 = vmatprep.subr.mxu0 0.0
    %847 = vmatpush1.msra.mxu0 0.0
    %848 = vmatprep.subr.mxu0 0.0
    %849 = vmatpush1.msra.mxu0 0.0
    %850 = vmatprep.subr.mxu0 0.0
    %851 = vmatpush1.msra.mxu0 0.0
    %852 = vmatprep.subr.mxu0 0.0
    %853 = vmatpush1.msra.mxu0 0.0
    %854 = vmatprep.subr.mxu0 0.0
    %855 = vmatpush1.msra.mxu0 0.0
    %856 = vmatprep.subr.mxu0 0.0
    %857 = vmatpush1.msra.mxu0 0.0
    %858 = vmatprep.subr.mxu0 0.0
    %859 = vmatpush1.msra.mxu0 0.0
    %860 = vmatprep.subr.mxu0 0.0
    %861 = vmatpush1.msra.mxu0 0.0
    %862 = vmatprep.subr.mxu0 0.0
    %863 = vmatpush1.msra.mxu0 0.0
    %864 = vmatprep.subr.mxu0 0.0
    %865 = vmatpush1.msra.mxu0 0.0
    %866 = vmatprep.subr.mxu0 0.0
    %867 = vmatpush1.msra.mxu0 0.0
    %868 = vmatprep.subr.mxu0 0.0
    %869 = vmatpush1.msra.mxu0 0.0
    %870 = vmatprep.subr.mxu0 0.0
    %871 = vmatpush1.msra.mxu0 0.0
    %872 = vmatprep.subr.mxu0 0.0
    %873 = vmatpush1.msra.mxu0 0.0
    %874 = vmatprep.subr.mxu0 0.0
    %875 = vmatpush1.msra.mxu0 0.0
    %876 = vmatprep.subr.mxu0 0.0
    %877 = vmatpush1.msra.mxu0 0.0
    %878 = vmatprep.subr.mxu0 0.0
    %879 = vmatpush1.msra.mxu0 0.0
    %880 = vmatprep.subr.mxu0 0.0
    %881 = vmatpush1.msra.mxu0 0.0
    %882 = vmatprep.subr.mxu0 0.0
    %883 = vmatpush1.msra.mxu0 0.0
    %884 = vmatprep.mubr.f32.mxu0 0.0
    %885 = vmatmul.mubr.f32.gmra.mrb[0].mxu0 %v818
    %v886 = vpop.f32.mrb[0].mxu0
    %v887 = vadd.f32 0.0, %v886
    %v888 = vpop.f32.mrb[0].mxu0
    %v889 = vadd.f32 0.0, %v888
    %890 = vdwg.mxu0
    %v893 = vcombine.low %v887, %v889
    %v895 = vunpack.c.l.s4 1983009808
    %v896 = vunpack.c.0.s8 %v895
    %v897 = vlaneseq
    %v898 = vshrl.u32 %v897, 7
    %v899 = vsub.s32 %v896, %v898
    %v900 = vrot.slane %v893, %v899
    %v902 = vadd.f32 %v816, %v900
    %v903 = vtanh.pop %v902
    %v904 = vmul.f32 %v903, 0.5
    %v905 = vadd.f32 %v904, 0.5
    %v906 = vmul.f32 %v905, %v805
    %908 = vrot.lane.b32.xlu0 %v903, 64
    %v909 = vpop.permute.xlu0 %908
    %v910 = vrot.slane %v909, 2
    %v912 = vmul.f32 %v905, %v910
    %914 = vrot.lane.b32.xlu0 %v912, 64
    %v915 = vpop.permute.xlu0 %914
    %v917 = vadd.f32 %v906, %v915
    %v918 = vtanh.pop %v917
    %v920 = vrot.slane %v905, 2
    %923 = vrot.lane.b32.xlu0 %v918, 64
    %v924 = vpop.permute.xlu0 %923
    %v926 = vmul.f32 %v920, %v924
    %s927 = scalar_lea.vmem [#allocation2], 24
    %v928 = vld [vmem:[%s927] sm:$0xf]
    %v930 = vsel %vm256, %v926, 0
    %932 = vmatprep.subr.mxu0 %v240
    %933 = vmatpush1.msra.mxu0 %v239
    %934 = vmatprep.subr.mxu0 %v242
    %935 = vmatpush1.msra.mxu0 %v241
    %936 = vmatprep.subr.mxu0 %v244
    %937 = vmatpush1.msra.mxu0 %v243
    %938 = vmatprep.subr.mxu0 %v246
    %939 = vmatpush1.msra.mxu0 %v245
    %940 = vmatprep.subr.mxu0 %v248
    %941 = vmatpush1.msra.mxu0 %v247
    %942 = vmatprep.subr.mxu0 %v250
    %943 = vmatpush1.msra.mxu0 %v249
    %944 = vmatprep.subr.mxu0 %v252
    %945 = vmatpush1.msra.mxu0 %v251
    %946 = vmatprep.subr.mxu0 %v254
    %947 = vmatpush1.msra.mxu0 %v253
    %948 = vmatprep.subr.mxu0 0.0
    %949 = vmatpush1.msra.mxu0 0.0
    %950 = vmatprep.subr.mxu0 0.0
    %951 = vmatpush1.msra.mxu0 0.0
    %952 = vmatprep.subr.mxu0 0.0
    %953 = vmatpush1.msra.mxu0 0.0
    %954 = vmatprep.subr.mxu0 0.0
    %955 = vmatpush1.msra.mxu0 0.0
    %956 = vmatprep.subr.mxu0 0.0
    %957 = vmatpush1.msra.mxu0 0.0
    %958 = vmatprep.subr.mxu0 0.0
    %959 = vmatpush1.msra.mxu0 0.0
    %960 = vmatprep.subr.mxu0 0.0
    %961 = vmatpush1.msra.mxu0 0.0
    %962 = vmatprep.subr.mxu0 0.0
    %963 = vmatpush1.msra.mxu0 0.0
    %964 = vmatprep.subr.mxu0 0.0
    %965 = vmatpush1.msra.mxu0 0.0
    %966 = vmatprep.subr.mxu0 0.0
    %967 = vmatpush1.msra.mxu0 0.0
    %968 = vmatprep.subr.mxu0 0.0
    %969 = vmatpush1.msra.mxu0 0.0
    %970 = vmatprep.subr.mxu0 0.0
    %971 = vmatpush1.msra.mxu0 0.0
    %972 = vmatprep.subr.mxu0 0.0
    %973 = vmatpush1.msra.mxu0 0.0
    %974 = vmatprep.subr.mxu0 0.0
    %975 = vmatpush1.msra.mxu0 0.0
    %976 = vmatprep.subr.mxu0 0.0
    %977 = vmatpush1.msra.mxu0 0.0
    %978 = vmatprep.subr.mxu0 0.0
    %979 = vmatpush1.msra.mxu0 0.0
    %980 = vmatprep.subr.mxu0 0.0
    %981 = vmatpush1.msra.mxu0 0.0
    %982 = vmatprep.subr.mxu0 0.0
    %983 = vmatpush1.msra.mxu0 0.0
    %984 = vmatprep.subr.mxu0 0.0
    %985 = vmatpush1.msra.mxu0 0.0
    %986 = vmatprep.subr.mxu0 0.0
    %987 = vmatpush1.msra.mxu0 0.0
    %988 = vmatprep.subr.mxu0 0.0
    %989 = vmatpush1.msra.mxu0 0.0
    %990 = vmatprep.subr.mxu0 0.0
    %991 = vmatpush1.msra.mxu0 0.0
    %992 = vmatprep.subr.mxu0 0.0
    %993 = vmatpush1.msra.mxu0 0.0
    %994 = vmatprep.subr.mxu0 0.0
    %995 = vmatpush1.msra.mxu0 0.0
    %996 = vmatprep.mubr.f32.mxu0 0.0
    %997 = vmatmul.mubr.f32.gmra.mrb[0].mxu0 %v930
    %v998 = vpop.f32.mrb[0].mxu0
    %v999 = vadd.f32 0.0, %v998
    %v1000 = vpop.f32.mrb[0].mxu0
    %v1001 = vadd.f32 0.0, %v1000
    %1002 = vdwg.mxu0
    %v1005 = vcombine.low %v999, %v1001
    %v1007 = vunpack.c.l.s4 1983009808
    %v1008 = vunpack.c.0.s8 %v1007
    %v1009 = vlaneseq
    %v1010 = vshrl.u32 %v1009, 7
    %v1011 = vsub.s32 %v1008, %v1010
    %v1012 = vrot.slane %v1005, %v1011
    %v1014 = vadd.f32 %v928, %v1012
    %v1015 = vtanh.pop %v1014
    %v1016 = vmul.f32 %v1015, 0.5
    %v1017 = vadd.f32 %v1016, 0.5
    %v1018 = vmul.f32 %v1017, %v917
    %1020 = vrot.lane.b32.xlu0 %v1015, 64
    %v1021 = vpop.permute.xlu0 %1020
    %v1022 = vrot.slane %v1021, 2
    %v1024 = vmul.f32 %v1017, %v1022
    %1026 = vrot.lane.b32.xlu0 %v1024, 64
    %v1027 = vpop.permute.xlu0 %1026
    %v1029 = vadd.f32 %v1018, %v1027
    %v1030 = vtanh.pop %v1029
    %v1032 = vrot.slane %v1017, 2
    %1035 = vrot.lane.b32.xlu0 %v1030, 64
    %v1036 = vpop.permute.xlu0 %1035
    %v1038 = vmul.f32 %v1032, %v1036
    %s1039 = scalar_lea.vmem [#allocation2], 28
    %v1040 = vld [vmem:[%s1039] sm:$0xf]
    %v1042 = vsel %vm256, %v1038, 0
    %1044 = vmatprep.subr.mxu0 %v240
    %1045 = vmatpush1.msra.mxu0 %v239
    %1046 = vmatprep.subr.mxu0 %v242
    %1047 = vmatpush1.msra.mxu0 %v241
    %1048 = vmatprep.subr.mxu0 %v244
    %1049 = vmatpush1.msra.mxu0 %v243
    %1050 = vmatprep.subr.mxu0 %v246
    %1051 = vmatpush1.msra.mxu0 %v245
    %1052 = vmatprep.subr.mxu0 %v248
    %1053 = vmatpush1.msra.mxu0 %v247
    %1054 = vmatprep.subr.mxu0 %v250
    %1055 = vmatpush1.msra.mxu0 %v249
    %1056 = vmatprep.subr.mxu0 %v252
    %1057 = vmatpush1.msra.mxu0 %v251
    %1058 = vmatprep.subr.mxu0 %v254
    %1059 = vmatpush1.msra.mxu0 %v253
    %1060 = vmatprep.subr.mxu0 0.0
    %1061 = vmatpush1.msra.mxu0 0.0
    %1062 = vmatprep.subr.mxu0 0.0
    %1063 = vmatpush1.msra.mxu0 0.0
    %1064 = vmatprep.subr.mxu0 0.0
    %1065 = vmatpush1.msra.mxu0 0.0
    %1066 = vmatprep.subr.mxu0 0.0
    %1067 = vmatpush1.msra.mxu0 0.0
    %1068 = vmatprep.subr.mxu0 0.0
    %1069 = vmatpush1.msra.mxu0 0.0
    %1070 = vmatprep.subr.mxu0 0.0
    %1071 = vmatpush1.msra.mxu0 0.0
    %1072 = vmatprep.subr.mxu0 0.0
    %1073 = vmatpush1.msra.mxu0 0.0
    %1074 = vmatprep.subr.mxu0 0.0
    %1075 = vmatpush1.msra.mxu0 0.0
    %1076 = vmatprep.subr.mxu0 0.0
    %1077 = vmatpush1.msra.mxu0 0.0
    %1078 = vmatprep.subr.mxu0 0.0
    %1079 = vmatpush1.msra.mxu0 0.0
    %1080 = vmatprep.subr.mxu0 0.0
    %1081 = vmatpush1.msra.mxu0 0.0
    %1082 = vmatprep.subr.mxu0 0.0
    %1083 = vmatpush1.msra.mxu0 0.0
    %1084 = vmatprep.subr.mxu0 0.0
    %1085 = vmatpush1.msra.mxu0 0.0
    %1086 = vmatprep.subr.mxu0 0.0
    %1087 = vmatpush1.msra.mxu0 0.0
    %1088 = vmatprep.subr.mxu0 0.0
    %1089 = vmatpush1.msra.mxu0 0.0
    %1090 = vmatprep.subr.mxu0 0.0
    %1091 = vmatpush1.msra.mxu0 0.0
    %1092 = vmatprep.subr.mxu0 0.0
    %1093 = vmatpush1.msra.mxu0 0.0
    %1094 = vmatprep.subr.mxu0 0.0
    %1095 = vmatpush1.msra.mxu0 0.0
    %1096 = vmatprep.subr.mxu0 0.0
    %1097 = vmatpush1.msra.mxu0 0.0
    %1098 = vmatprep.subr.mxu0 0.0
    %1099 = vmatpush1.msra.mxu0 0.0
    %1100 = vmatprep.subr.mxu0 0.0
    %1101 = vmatpush1.msra.mxu0 0.0
    %1102 = vmatprep.subr.mxu0 0.0
    %1103 = vmatpush1.msra.mxu0 0.0
    %1104 = vmatprep.subr.mxu0 0.0
    %1105 = vmatpush1.msra.mxu0 0.0
    %1106 = vmatprep.subr.mxu0 0.0
    %1107 = vmatpush1.msra.mxu0 0.0
    %1108 = vmatprep.mubr.f32.mxu0 0.0
    %1109 = vmatmul.mubr.f32.gmra.mrb[0].mxu0 %v1042
    %v1110 = vpop.f32.mrb[0].mxu0
    %v1111 = vadd.f32 0.0, %v1110
    %v1112 = vpop.f32.mrb[0].mxu0
    %v1113 = vadd.f32 0.0, %v1112
    %1114 = vdwg.mxu0
    %v1117 = vcombine.low %v1111, %v1113
    %v1119 = vunpack.c.l.s4 1983009808
    %v1120 = vunpack.c.0.s8 %v1119
    %v1121 = vlaneseq
    %v1122 = vshrl.u32 %v1121, 7
    %v1123 = vsub.s32 %v1120, %v1122
    %v1124 = vrot.slane %v1117, %v1123
    %v1126 = vadd.f32 %v1040, %v1124
    %v1127 = vtanh.pop %v1126
    %v1128 = vmul.f32 %v1127, 0.5
    %v1129 = vadd.f32 %v1128, 0.5
    %v1130 = vmul.f32 %v1129, %v1029
    %1132 = vrot.lane.b32.xlu0 %v1127, 64
    %v1133 = vpop.permute.xlu0 %1132
    %v1134 = vrot.slane %v1133, 2
    %v1136 = vmul.f32 %v1129, %v1134
    %1138 = vrot.lane.b32.xlu0 %v1136, 64
    %v1139 = vpop.permute.xlu0 %1138
    %v1141 = vadd.f32 %v1130, %v1139
    %v1142 = vtanh.pop %v1141
    %v1144 = vrot.slane %v1129, 2
    %1147 = vrot.lane.b32.xlu0 %v1142, 64
    %v1148 = vpop.permute.xlu0 %1147
    %v1150 = vmul.f32 %v1144, %v1148
    %v1151 = vld [vmem:[%s4] sm:$0x1]
    %v1153 = vlaneseq
    %v1154 = vshrl.u32 %v1153, 7
    %v1155 = vsub.s32 0, %v1154
    %v1156 = vrot.slane %v1151, %v1155
    %v1158 = vmul.f32 %v1150, %v1156
    %vm1159 = vcmask 517120
    %v1160 = vsel %vm1159, %v1158, 0.0
    %1161 = vadd.xlane.f32.xlu0 %v1160
    %v1162 = vpop.xlane.xlu0 %1161
    %v1163 = vld [vmem:[#allocation3] sm:$0x1]
    %v1165 = vlaneseq
    %v1166 = vshrl.u32 %v1165, 7
    %v1167 = vsub.s32 0, %v1166
    %v1168 = vrot.slane %v1163, %v1167
    %v1170 = vadd.f32 %v1162, %v1168
    %vm1171 = vcmask 1024
    %1172 = vst.msk [vmem:[%s6] sm:$0x3] %vm1171, %v1170
    // Predicated region
    $region30: #{lstm_model_forward.1} parent=1 // pred_check
      _
    $region31: #{lstm_model_forward.1} parent=1 // pred_check_branch
      %1174 = sbr.rel (0) target = $region33
    $region32: #{lstm_model_forward.1} parent=1 // pred_region
      _
    $region33: #{lstm_model_forward.1} parent=1 // pred_fallthru
      _
    // Predicated region
    $region34: #{lstm_model_forward.1} parent=1 // pred_check
      _
    $region35: #{lstm_model_forward.1} parent=1 // pred_check_branch
      %1176 = sbr.rel (0) target = $region37
    $region36: #{lstm_model_forward.1} parent=1 // pred_region
      _
    $region37: #{lstm_model_forward.1} parent=1 // pred_fallthru
      _
    %1177 = vsyncpa [#allocation5], 1

</llo_original>
